<compile_context>
chip_gen: v5e
topology: v5e:2x2
jax: 0.10.0
libtpu: 0.0.40
codegen_flags: <defaults>
</compile_context>

<pallas_src>
import math

import jax
import jax.numpy as jnp
from jax.experimental import pallas as pl
from jax.experimental.pallas import tpu as pltpu


def lstm_stack_kernel(x_ref, hc0_ref, w_ref, y_ref, hc_ref, xh_ref):
    """One LSTM layer per grid step; grid = (timesteps, layers).

    x_ref:   (B, D_x)        timestep input, pre-padded to D_x = max(in, H), bf16
    hc0_ref: (L, B, 2H)      initial packed state [h | c] (f32), read once
    w_ref:   (L, D_x+H, 4H)  fused [W_ih^T ; W_hh^T] per layer, bf16,
                             VMEM-resident for the whole launch
    y_ref:   (B, H)          per-timestep output (last layer's h), f32
    hc_ref:  (L, B, 2H)      packed new state; constant-index output block that
                             also serves as the carried state across the grid
    xh_ref:  (B, D_x+H)      VMEM scratch holding the fused matmul operand;
                             carries the layer input across layer steps.
    Gate order matches PyTorch: [i, f, g, o].
    """
    t = pl.program_id(0)
    l = pl.program_id(1)
    L = pl.num_programs(1)
    H = hc_ref.shape[2] // 2
    D_cat = xh_ref.shape[1]
    D_x = D_cat - H

    # First grid step: seed the carried state from hc0.  The hc output block has
    # a constant index map, so it stays resident in VMEM for the whole grid and
    # is written back to HBM exactly once at the end.
    @pl.when(jnp.logical_and(t == 0, l == 0))
    def _():
        hc_ref[...] = hc0_ref[...]

    # Layer 0 of each timestep: the (already padded) input fills lanes [0, D_x).
    @pl.when(l == 0)
    def _():
        xh_ref[:, :D_x] = x_ref[...]

    hc_prev = hc_ref[l]                 # (B, 2H) f32
    h_prev = hc_prev[:, :H]
    c_prev = hc_prev[:, H:]

    # This layer's previous hidden state in lanes [D_x, D_x + H).
    xh_ref[:, D_x:] = h_prev.astype(xh_ref.dtype)

    # Single fused K = D_x + H bf16 MXU matmul producing all four gates.
    # Weight slab is read from the resident full-stack block (no per-layer DMA).
    gates = jnp.dot(xh_ref[...], w_ref[l], preferred_element_type=jnp.float32)

    # Gate/cell math stays f32 (v5e VPU/EUP have no bf16; c must stay f32).
    i = jax.nn.sigmoid(gates[:, 0 * H:1 * H])
    f = jax.nn.sigmoid(gates[:, 1 * H:2 * H])
    g = jnp.tanh(gates[:, 2 * H:3 * H])
    o = jax.nn.sigmoid(gates[:, 3 * H:4 * H])

    c_new = f * c_prev + i * g
    h_new = o * jnp.tanh(c_new)

    # One 2H-lane-wide store of the merged state (h_new, c_new are one vreg
    # each at H=128/f32, so the lane concat is free layout).
    hc_ref[l] = jnp.concatenate([h_new, c_new], axis=-1)

    # Last layer: emit this timestep's output.
    @pl.when(l == L - 1)
    def _():
        y_ref[...] = h_new.astype(y_ref.dtype)

    # Carry h_new as the next layer's input.  Lanes [H, D_x) keep stale values;
    # pack_lstm_params zero-fills the corresponding weight rows for layers > 0,
    # so they contribute nothing.
    @pl.when(l + 1 < L)
    def _():
        xh_ref[:, :H] = h_new.astype(xh_ref.dtype)

    # TODO(synk): PyTorch applies dropout(drop_prob_lm) between layers in
    # training mode when num_layers > 1; eval semantics (no dropout) here.


def rnn_unit_decode(xs, hc0, w_packed):
    """Run T LSTM decode steps in ONE pallas_call (weights fetched once).

    xs:       (T, B, input_size) f32
    hc0:      (L, B, 2H) f32, packed [h | c]
    w_packed: (L, D_x + H, 4H) bf16, D_x = max(input_size, H);
              rows [0:d_in) = W_ih^T, rows [D_x:D_x+H) = W_hh^T, rest zero.
    Returns (ys, hc_new): ys (T, B, H) = last-layer h per step; hc_new (L, B, 2H).
    """
    T, B, d_in = xs.shape
    L, _, twoH = hc0.shape
    H = twoH // 2
    D_cat = w_packed.shape[1]
    D_x = D_cat - H

    # Pad the timestep input to D_x lanes and cast to the matmul dtype.
    pad = D_x - d_in
    xs_p = jnp.pad(xs, ((0, 0), (0, 0), (0, pad))) if pad else xs
    xs_p = xs_p.astype(w_packed.dtype)

    w_itemsize = jnp.dtype(w_packed.dtype).itemsize
    cost = pl.CostEstimate(
        flops=2 * T * L * B * D_cat * 4 * H,
        transcendentals=5 * T * L * B * H,
        # Weights counted ONCE: they are VMEM-resident for the whole launch.
        bytes_accessed=(w_packed.size * w_itemsize
                        + xs_p.size * w_itemsize
                        + 2 * hc0.size * 4          # hc in + out
                        + T * B * H * 4),           # ys
    )

    ys, hc_new = pl.pallas_call(
        lstm_stack_kernel,
        out_shape=(jax.ShapeDtypeStruct((T, B, H), hc0.dtype),
                   jax.ShapeDtypeStruct((L, B, twoH), hc0.dtype)),
        grid_spec=pltpu.PrefetchScalarGridSpec(
            num_scalar_prefetch=0,
            grid=(T, L),
            in_specs=[
                # timestep input: re-fetched only when t changes
                pl.BlockSpec((None, B, D_x), lambda t, l: (t, 0, 0)),
                # initial state: one full block, read once
                pl.BlockSpec((L, B, twoH), lambda t, l: (0, 0, 0)),
                # full weight stack: constant index -> single DMA, VMEM-resident
                pl.BlockSpec((L, D_cat, 4 * H), lambda t, l: (0, 0, 0)),
            ],
            out_specs=(
                pl.BlockSpec((None, B, H), lambda t, l: (t, 0, 0)),     # ys[t]
                pl.BlockSpec((L, B, twoH), lambda t, l: (0, 0, 0)),     # hc (resident)
            ),
            scratch_shapes=[pltpu.VMEM((B, D_cat), w_packed.dtype)],
        ),
        compiler_params=pltpu.CompilerParams(
            # time and layers are strictly serial (state carry); single core.
            dimension_semantics=("arbitrary", "arbitrary"),
        ),
        input_output_aliases={1: 1},     # hc0 -> hc_new in place
        cost_estimate=cost,
    )(xs_p, hc0, w_packed)
    return ys, hc_new


def rnn_unit_forward(xt, state, w_packed):
    """Module-equivalent single-timestep forward (RNNUnit.forward, rnn_type='lstm').

    xt:    (B, input_size) f32
    state: (h, c), each (num_layers, B, rnn_size) f32
    Returns (output, (h_new, c_new)); output == h_new[-1].
    """
    h0, c0 = state
    hc0 = pack_state(h0, c0)
    ys, hc_new = rnn_unit_decode(xt[None], hc0, w_packed)
    h_new, c_new = unpack_state(hc_new)
    return ys[0], (h_new, c_new)


def pack_state(h, c):
    return jnp.concatenate([h, c], axis=-1)


def unpack_state(hc):
    H = hc.shape[-1] // 2
    return hc[..., :H], hc[..., H:]


def init_lstm_params(key, input_size, hidden_size, num_layers,
                     dtype=jnp.float32):
    """PyTorch-style init: U(-1/sqrt(H), 1/sqrt(H)), PyTorch weight layout."""
    params = []
    bound = 1.0 / math.sqrt(hidden_size)
    for layer in range(num_layers):
        d_in = input_size if layer == 0 else hidden_size
        key, k1, k2 = jax.random.split(key, 3)
        w_ih = jax.random.uniform(k1, (4 * hidden_size, d_in),
                                  minval=-bound, maxval=bound, dtype=dtype)
        w_hh = jax.random.uniform(k2, (4 * hidden_size, hidden_size),
                                  minval=-bound, maxval=bound, dtype=dtype)
        params.append((w_ih, w_hh))
    return params


def pack_lstm_params(params, input_size, hidden_size, dtype=jnp.bfloat16):
    """Fuse and transpose weights: per layer a (D_x + H, 4H) block with rows
    [0:d_in) = W_ih^T, rows [D_x:D_x+H) = W_hh^T.

    Rows [d_in, D_x) MUST stay zero: the kernel leaves stale data in the
    corresponding xh lanes for layers > 0, relying on these zero weight rows.
    """
    H = hidden_size
    D_x = max(input_size, H)
    layers = []
    for (w_ih, w_hh) in params:
        d_in = w_ih.shape[1]
        assert d_in <= D_x
        blk = jnp.zeros((D_x + H, 4 * H), dtype)
        blk = blk.at[:d_in, :].set(w_ih.T.astype(dtype))
        blk = blk.at[D_x:, :].set(w_hh.T.astype(dtype))
        layers.append(blk)
    return jnp.stack(layers, axis=0)


def _reference_decode(xs, h0, c0, params, hidden_size,
                      matmul_dtype=jnp.bfloat16):
    """Pure-JAX reference with the same bf16-matmul / f32-gate recipe."""
    H = hidden_size
    h = [h0[l] for l in range(len(params))]
    c = [c0[l] for l in range(len(params))]
    ys = []
    for t in range(xs.shape[0]):
        layer_in = xs[t]
        for l, (w_ih, w_hh) in enumerate(params):
            xh = jnp.concatenate([layer_in.astype(matmul_dtype),
                                  h[l].astype(matmul_dtype)], axis=1)
            w = jnp.concatenate([w_ih.T, w_hh.T], axis=0).astype(matmul_dtype)
            gates = jnp.dot(xh, w, preferred_element_type=jnp.float32)
            i = jax.nn.sigmoid(gates[:, 0 * H:1 * H])
            f = jax.nn.sigmoid(gates[:, 1 * H:2 * H])
            g = jnp.tanh(gates[:, 2 * H:3 * H])
            o = jax.nn.sigmoid(gates[:, 3 * H:4 * H])
            c[l] = f * c[l] + i * g
            h[l] = o * jnp.tanh(c[l])
            layer_in = h[l]
        ys.append(layer_in)
    return jnp.stack(ys, 0), jnp.stack(h, 0), jnp.stack(c, 0)


if __name__ == "__main__":
    batch = 8
    input_encoding_size = 64
    video_encoding_size = 64
    input_size = input_encoding_size + video_encoding_size  # 'concat' -> 128
    rnn_size = 128
    H = rnn_size
    T = 6

    for num_layers in (1, 2):
        key = jax.random.PRNGKey(0)
        kx, kh, kc, kp, ks = jax.random.split(key, 5)
        xt = jax.random.normal(kx, (batch, input_size), dtype=jnp.float32)
        h0 = jax.random.normal(kh, (num_layers, batch, H), dtype=jnp.float32)
        c0 = jax.random.normal(kc, (num_layers, batch, H), dtype=jnp.float32)
        xs = jax.random.normal(ks, (T, batch, input_size), dtype=jnp.float32)

        params = init_lstm_params(kp, input_size, H, num_layers)
        w_packed = pack_lstm_params(params, input_size, H)

        # --- module-equivalent single-step forward ---------------------------
        fwd = jax.jit(rnn_unit_forward)
        output, (h_new, c_new) = fwd(xt, (h0, c0), w_packed)
        jax.block_until_ready((output, h_new, c_new))

        ref_y, ref_h, ref_c = _reference_decode(xt[None], h0, c0, params, H)
        assert jnp.allclose(h_new, ref_h, atol=2e-3, rtol=2e-3)
        assert jnp.allclose(c_new, ref_c, atol=2e-3, rtol=2e-3)
        assert jnp.allclose(output, ref_y[0], atol=2e-3, rtol=2e-3)
        assert output.shape == (batch, rnn_size)
        assert h_new.shape == (num_layers, batch, rnn_size)
        assert c_new.shape == (num_layers, batch, rnn_size)

        # Looser sanity check vs. full-f32 (PyTorch-equivalent) math.
        f_y, f_h, f_c = _reference_decode(xt[None], h0, c0, params, H,
                                          matmul_dtype=jnp.float32)
        assert jnp.allclose(h_new, f_h, atol=5e-2, rtol=5e-2)
        assert jnp.allclose(c_new, f_c, atol=5e-2, rtol=5e-2)

        # --- fused T-step decode: one launch, weights DMA'd once -------------
        hc0 = pack_state(h0, c0)
        dec = jax.jit(rnn_unit_decode)
        ys, hc_T = dec(xs, hc0, w_packed)
        jax.block_until_ready((ys, hc_T))

        ref_ys, ref_hT, ref_cT = _reference_decode(xs, h0, c0, params, H)
        hT, cT = unpack_state(hc_T)
        assert jnp.allclose(ys, ref_ys, atol=1e-2, rtol=1e-2)
        assert jnp.allclose(hT, ref_hT, atol=1e-2, rtol=1e-2)
        assert jnp.allclose(cT, ref_cT, atol=1e-2, rtol=1e-2)

        # --- single-step hot loop with donated (truly in-place) state --------
        step = jax.jit(rnn_unit_decode, donate_argnums=(1,))
        hc = pack_state(h0, c0)
        for t in range(T):
            y, hc = step(xs[t][None], hc, w_packed)
        jax.block_until_ready((y, hc))
        hT2, cT2 = unpack_state(hc)
        assert jnp.allclose(hT2, ref_hT, atol=1e-2, rtol=1e-2)
        assert jnp.allclose(cT2, ref_cT, atol=1e-2, rtol=1e-2)
        assert jnp.allclose(y[0], ref_ys[-1], atol=1e-2, rtol=1e-2)

    print("KERNEL_OK")
</pallas_src>

<mosaic_0001>
module attributes {stable_mosaic.version = 11 : i64} {
  func.func @lstm_stack_kernel(%arg0: i32, %arg1: i32, %arg2: memref<1x8x128xbf16, #tpu.memory_space<vmem>>, %arg3: memref<1x8x256xf32, #tpu.memory_space<vmem>>, %arg4: memref<1x256x512xbf16, #tpu.memory_space<vmem>>, %arg5: memref<1x8x128xf32, #tpu.memory_space<vmem>>, %arg6: memref<1x8x256xf32, #tpu.memory_space<vmem>>, %arg7: memref<8x256xbf16, #tpu.memory_space<vmem>>) attributes {dimension_semantics = [#tpu.dimension_semantics<arbitrary>, #tpu.dimension_semantics<arbitrary>], iteration_bounds = array<i64: 1, 1>, scalar_prefetch = 0 : i64, scratch_operands = 1 : i64, tpu.core_type = #tpu.core_type<tc>, window_params = [{transform_indices = @transform_0, window_bounds = array<i64: 1, 8, 128>}, {pipeline_mode = #tpu.pipeline_mode<synchronous>, transform_indices = @transform_1, window_bounds = array<i64: 1, 8, 256>}, {pipeline_mode = #tpu.pipeline_mode<synchronous>, transform_indices = @transform_2, window_bounds = array<i64: 1, 256, 512>}, {transform_indices = @transform_3, window_bounds = array<i64: 1, 8, 128>}, {pipeline_mode = #tpu.pipeline_mode<synchronous>, transform_indices = @transform_4, window_bounds = array<i64: 1, 8, 256>}]} {
    %c0_i32 = arith.constant 0 : i32
    %0 = arith.cmpi eq, %arg0, %c0_i32 : i32
    %c0_i32_0 = arith.constant 0 : i32
    %1 = arith.cmpi eq, %arg1, %c0_i32_0 : i32
    %2 = arith.andi %0, %1 : i1
    %3 = arith.extui %2 : i1 to i32
    %c0_i32_1 = arith.constant 0 : i32
    %4 = arith.cmpi ne, %3, %c0_i32_1 : i32
    scf.if %4 {
      %c0_19 = arith.constant 0 : index
      %c0_20 = arith.constant 0 : index
      %c0_21 = arith.constant 0 : index
      %57 = vector.load %arg3[%c0_19, %c0_20, %c0_21] : memref<1x8x256xf32, #tpu.memory_space<vmem>>, vector<1x8x256xf32>
      %c0_22 = arith.constant 0 : index
      %c0_23 = arith.constant 0 : index
      %c0_24 = arith.constant 0 : index
      %58 = vector.load %arg6[%c0_22, %c0_23, %c0_24] : memref<1x8x256xf32, #tpu.memory_space<vmem>>, vector<1x8x256xf32>
      tpu.vector_store %arg6[%c0_22, %c0_23, %c0_24], %57 {strides = array<i32>} : memref<1x8x256xf32, #tpu.memory_space<vmem>>, vector<1x8x256xf32>,
    } else {
    }
    %c0_i32_2 = arith.constant 0 : i32
    %5 = arith.cmpi eq, %arg1, %c0_i32_2 : i32
    %6 = arith.extui %5 : i1 to i32
    %c0_i32_3 = arith.constant 0 : i32
    %7 = arith.cmpi ne, %6, %c0_i32_3 : i32
    scf.if %7 {
      %c0_19 = arith.constant 0 : index
      %c0_20 = arith.constant 0 : index
      %c0_21 = arith.constant 0 : index
      %57 = vector.load %arg2[%c0_19, %c0_20, %c0_21] : memref<1x8x128xbf16, #tpu.memory_space<vmem>>, vector<1x8x128xbf16>
      %58 = vector.shape_cast %57 : vector<1x8x128xbf16> to vector<8x128xbf16>
      %c0_22 = arith.constant 0 : index
      %c0_23 = arith.constant 0 : index
      %59 = vector.load %arg7[%c0_22, %c0_23] : memref<8x256xbf16, #tpu.memory_space<vmem>>, vector<8x128xbf16>
      tpu.vector_store %arg7[%c0_22, %c0_23], %58 {strides = array<i32>} : memref<8x256xbf16, #tpu.memory_space<vmem>>, vector<8x128xbf16>,
    } else {
    }
    %8 = arith.index_cast %arg1 : i32 to index
    %c0 = arith.constant 0 : index
    %c0_4 = arith.constant 0 : index
    %9 = vector.load %arg6[%8, %c0, %c0_4] : memref<1x8x256xf32, #tpu.memory_space<vmem>>, vector<1x8x256xf32>
    %10 = vector.shape_cast %9 : vector<1x8x256xf32> to vector<8x256xf32>
    %11 = vector.extract_strided_slice %10 {offsets = [0, 0], sizes = [8, 128], strides = [1, 1]} : vector<8x256xf32> to vector<8x128xf32>
    %12 = vector.extract_strided_slice %10 {offsets = [0, 128], sizes = [8, 128], strides = [1, 1]} : vector<8x256xf32> to vector<8x128xf32>
    %13 = arith.truncf %11 : vector<8x128xf32> to vector<8x128xbf16>
    %c0_5 = arith.constant 0 : index
    %c128 = arith.constant 128 : index
    %14 = vector.load %arg7[%c0_5, %c128] : memref<8x256xbf16, #tpu.memory_space<vmem>>, vector<8x128xbf16>
    tpu.vector_store %arg7[%c0_5, %c128], %13 {strides = array<i32>} : memref<8x256xbf16, #tpu.memory_space<vmem>>, vector<8x128xbf16>,
    %c0_6 = arith.constant 0 : index
    %c0_7 = arith.constant 0 : index
    %15 = vector.load %arg7[%c0_6, %c0_7] : memref<8x256xbf16, #tpu.memory_space<vmem>>, vector<8x256xbf16>
    %16 = arith.index_cast %arg1 : i32 to index
    %c0_8 = arith.constant 0 : index
    %c0_9 = arith.constant 0 : index
    %17 = vector.load %arg4[%16, %c0_8, %c0_9] : memref<1x256x512xbf16, #tpu.memory_space<vmem>>, vector<1x256x512xbf16>
    %18 = vector.shape_cast %17 : vector<1x256x512xbf16> to vector<256x512xbf16>
    %cst = arith.constant dense<0.000000e+00> : vector<8x512xf32>
    %19 = tpu.matmul %15, %18, %cst {dimension_numbers = #tpu.dot_dimension_numbers<[1], [0], [0], [1], [0, 0, 1, 1], [], []>} : vector<8x256xbf16>, vector<256x512xbf16>, vector<8x512xf32> -> vector<8x512xf32>
    %20 = vector.extract_strided_slice %19 {offsets = [0, 0], sizes = [8, 128], strides = [1, 1]} : vector<8x512xf32> to vector<8x128xf32>
    %21 = arith.negf %20 : vector<8x128xf32>
    %22 = math.exp %21 : vector<8x128xf32>
    %cst_10 = arith.constant 1.000000e+00 : f32
    %23 = vector.broadcast %cst_10 : f32 to vector<8x128xf32>
    %24 = arith.addf %23, %22 : vector<8x128xf32>
    %25 = arith.divf %23, %24 : vector<8x128xf32>
    %26 = vector.extract_strided_slice %19 {offsets = [0, 128], sizes = [8, 128], strides = [1, 1]} : vector<8x512xf32> to vector<8x128xf32>
    %27 = arith.negf %26 : vector<8x128xf32>
    %28 = math.exp %27 : vector<8x128xf32>
    %cst_11 = arith.constant 1.000000e+00 : f32
    %29 = vector.broadcast %cst_11 : f32 to vector<8x128xf32>
    %30 = arith.addf %29, %28 : vector<8x128xf32>
    %31 = arith.divf %29, %30 : vector<8x128xf32>
    %32 = vector.extract_strided_slice %19 {offsets = [0, 256], sizes = [8, 128], strides = [1, 1]} : vector<8x512xf32> to vector<8x128xf32>
    %33 = math.tanh %32 : vector<8x128xf32>
    %34 = vector.extract_strided_slice %19 {offsets = [0, 384], sizes = [8, 128], strides = [1, 1]} : vector<8x512xf32> to vector<8x128xf32>
    %35 = arith.negf %34 : vector<8x128xf32>
    %36 = math.exp %35 : vector<8x128xf32>
    %cst_12 = arith.constant 1.000000e+00 : f32
    %37 = vector.broadcast %cst_12 : f32 to vector<8x128xf32>
    %38 = arith.addf %37, %36 : vector<8x128xf32>
    %39 = arith.divf %37, %38 : vector<8x128xf32>
    %40 = arith.mulf %31, %12 : vector<8x128xf32>
    %41 = arith.mulf %25, %33 : vector<8x128xf32>
    %42 = arith.addf %40, %41 : vector<8x128xf32>
    %43 = math.tanh %42 : vector<8x128xf32>
    %44 = arith.mulf %39, %43 : vector<8x128xf32>
    %45 = tpu.concatenate %44, %42 in 1 : vector<8x128xf32>, vector<8x128xf32> -> vector<8x256xf32>
    %46 = arith.index_cast %arg1 : i32 to index
    %c0_13 = arith.constant 0 : index
    %c0_14 = arith.constant 0 : index
    %47 = vector.load %arg6[%46, %c0_13, %c0_14] : memref<1x8x256xf32, #tpu.memory_space<vmem>>, vector<1x8x256xf32>
    %48 = vector.shape_cast %47 : vector<1x8x256xf32> to vector<8x256xf32>
    %49 = vector.shape_cast %45 : vector<8x256xf32> to vector<1x8x256xf32>
    tpu.vector_store %arg6[%46, %c0_13, %c0_14], %49 {strides = array<i32>} : memref<1x8x256xf32, #tpu.memory_space<vmem>>, vector<1x8x256xf32>,
    %c0_i32_15 = arith.constant 0 : i32
    %50 = arith.cmpi eq, %arg1, %c0_i32_15 : i32
    %51 = arith.extui %50 : i1 to i32
    %c0_i32_16 = arith.constant 0 : i32
    %52 = arith.cmpi ne, %51, %c0_i32_16 : i32
    scf.if %52 {
      %c0_19 = arith.constant 0 : index
      %c0_20 = arith.constant 0 : index
      %c0_21 = arith.constant 0 : index
      %57 = vector.load %arg5[%c0_19, %c0_20, %c0_21] : memref<1x8x128xf32, #tpu.memory_space<vmem>>, vector<1x8x128xf32>
      %58 = vector.shape_cast %57 : vector<1x8x128xf32> to vector<8x128xf32>
      %59 = vector.shape_cast %44 : vector<8x128xf32> to vector<1x8x128xf32>
      tpu.vector_store %arg5[%c0_19, %c0_20, %c0_21], %59 {strides = array<i32>} : memref<1x8x128xf32, #tpu.memory_space<vmem>>, vector<1x8x128xf32>,
    } else {
    }
    %c1_i32 = arith.constant 1 : i32
    %53 = arith.addi %arg1, %c1_i32 : i32
    %c1_i32_17 = arith.constant 1 : i32
    %54 = arith.cmpi slt, %53, %c1_i32_17 : i32
    %55 = arith.extui %54 : i1 to i32
    %c0_i32_18 = arith.constant 0 : i32
    %56 = arith.cmpi ne, %55, %c0_i32_18 : i32
    scf.if %56 {
      %57 = arith.truncf %44 : vector<8x128xf32> to vector<8x128xbf16>
      %c0_19 = arith.constant 0 : index
      %c0_20 = arith.constant 0 : index
      %58 = vector.load %arg7[%c0_19, %c0_20] : memref<8x256xbf16, #tpu.memory_space<vmem>>, vector<8x128xbf16>
      tpu.vector_store %arg7[%c0_19, %c0_20], %57 {strides = array<i32>} : memref<8x256xbf16, #tpu.memory_space<vmem>>, vector<8x128xbf16>,
    } else {
    }
    return
  }
  func.func @transform_0(%arg0: i32, %arg1: i32) -> (i32, i32, i32) {
    %c0_i32 = arith.constant 0 : i32
    %c0_i32_0 = arith.constant 0 : i32
    %c0_i32_1 = arith.constant 0 : i32
    return %arg0, %c0_i32, %c0_i32_0 : i32, i32, i32
  }
  func.func @transform_1(%arg0: i32, %arg1: i32) -> (i32, i32, i32) {
    %c0_i32 = arith.constant 0 : i32
    %c0_i32_0 = arith.constant 0 : i32
    %c0_i32_1 = arith.constant 0 : i32
    %c0_i32_2 = arith.constant 0 : i32
    return %c0_i32, %c0_i32_0, %c0_i32_1 : i32, i32, i32
  }
  func.func @transform_2(%arg0: i32, %arg1: i32) -> (i32, i32, i32) {
    %c0_i32 = arith.constant 0 : i32
    %c0_i32_0 = arith.constant 0 : i32
    %c0_i32_1 = arith.constant 0 : i32
    %c0_i32_2 = arith.constant 0 : i32
    return %c0_i32, %c0_i32_0, %c0_i32_1 : i32, i32, i32
  }
  func.func @transform_3(%arg0: i32, %arg1: i32) -> (i32, i32, i32) {
    %c0_i32 = arith.constant 0 : i32
    %c0_i32_0 = arith.constant 0 : i32
    %c0_i32_1 = arith.constant 0 : i32
    return %arg0, %c0_i32, %c0_i32_0 : i32, i32, i32
  }
  func.func @transform_4(%arg0: i32, %arg1: i32) -> (i32, i32, i32) {
    %c0_i32 = arith.constant 0 : i32
    %c0_i32_0 = arith.constant 0 : i32
    %c0_i32_1 = arith.constant 0 : i32
    %c0_i32_2 = arith.constant 0 : i32
    return %c0_i32, %c0_i32_0, %c0_i32_1 : i32, i32, i32
  }
}

</mosaic_0001>

<llo_original>
// kernel: rnn_unit_forward.1
$region0: #{rnn_unit_forward.1}
  #allocation0 [shape = 'u32[]', space=smem, size = 0x4, offset = 0x4, fixed_abs, tag = 'smem constant byte address 0x4 - core index']
  #allocation1 [shape = 'u32[72,128]{1,0:T(1,128)}', space=vmem, size = 0x9000, scoped, tag = 'internal scratch']
  #allocation2 [shape = 'bf16[8,256]{1,0:T(8,128)(2,1)}', space=vmem, size = 0x1000, scoped, tag = 'scratch operand']
  %s0 = inlined_call_operand.vmem [shape: bf16[1,8,128], index: 0, kind: input, shape index: {}]
  %s1 = inlined_call_operand.vmem [shape: f32[1,8,256], index: 1, kind: input, shape index: {}, may-alias: {1,4}]
  %s2 = inlined_call_operand.hbm [shape: bf16[1,256,512], index: 2, kind: input, shape index: {}]
  %s3 = inlined_call_operand.hbm [shape: f32[1,8,128], index: 3, kind: output, shape index: {0}]
  %s4 = inlined_call_operand.vmem [shape: f32[1,8,256], index: 4, kind: output, shape index: {1}, may-alias: {1,4}]
  %5 = xla_tuple %s3, %s4
  %s6 = sld [smem:[#allocation0]]
  $region50: #{rnn_unit_forward.1} parent=0
    _
  %s8 = ssub.s32 1, %s6
  %s9 = scalar_select 0, %s8, %s6
  $region1: #{rnn_unit_forward.1} parent=0
    #allocation3 [shape = 'u8[262144]{0}', space=vmem, size = 0x40000, scoped, tag = 'input window, operand 2, single buffered']
    #allocation4 [shape = 's32[1]{0}', space=sflag, size = 0x4, scoped, tag = 'scoped memory for rnn_unit_forward.1']
    #allocation5 [shape = 's32[1]{0}', space=sflag, size = 0x4, scoped, tag = 'scoped memory for rnn_unit_forward.1']
    #allocation6 [shape = 'u8[4096]{0}', space=vmem, size = 0x1000, scoped, tag = 'output window, operand 0, single buffered']
    %10 = vsyncpa [#allocation4], 0
    %11 = vsyncpa [#allocation5], 0
    // Predicated region
    $region2: #{rnn_unit_forward.1} parent=1 // pred_check
      _
    $region3: #{rnn_unit_forward.1} parent=1 // pred_check_branch
      %13 = sbr.rel (0) target = $region5
    $region4: #{rnn_unit_forward.1} parent=1 // pred_region
      _
    $region5: #{rnn_unit_forward.1} parent=1 // pred_fallthru
      _
    // Predicated region
    $region6: #{rnn_unit_forward.1} parent=1 // pred_check
      _
    $region7: #{rnn_unit_forward.1} parent=1 // pred_check_branch
      %15 = sbr.rel (0) target = $region9
    $region8: #{rnn_unit_forward.1} parent=1 // pred_region
      _
    $region9: #{rnn_unit_forward.1} parent=1 // pred_fallthru
      _
    // Predicated region
    $region10: #{rnn_unit_forward.1} parent=1 // pred_check
      _
    $region11: #{rnn_unit_forward.1} parent=1 // pred_check_branch
      %17 = sbr.rel (0) target = $region13
    $region12: #{rnn_unit_forward.1} parent=1 // pred_region
      %19 = vsyncadd [#allocation4], 0
      %s20 = sshll.u32 %s2, 4
      %s21 = int_to_ptr.hbm [resolvable:$true] %s20
      %s22 = sshll.u32 [#allocation3], 4
      %s23 = int_to_ptr.vmem [resolvable:$true] %s22
      %28 = dma.hbm_to_vmem [thread:$0]  %s21, 8192, %s23, [#allocation4], 256, 256, 16
    $region13: #{rnn_unit_forward.1} parent=1 // pred_fallthru
      _
    // Predicated region
    $region14: #{rnn_unit_forward.1} parent=1 // pred_check
      _
    $region15: #{rnn_unit_forward.1} parent=1 // pred_check_branch
      %30 = sbr.rel (0) target = $region17
    $region16: #{rnn_unit_forward.1} parent=1 // pred_region
      %32 = dma.done [#allocation4], 8192
    $region17: #{rnn_unit_forward.1} parent=1 // pred_fallthru
      _
    %p33 = scmp.eq.s32.totalorder 0, 0
    %p34 = scmp.eq.s32.totalorder 0, 0
    %p35 = pnand %p33, %p34
    %p36 = pneg %p35
    // Predicated region
    $region18: #{rnn_unit_forward.1} parent=1 // pred_check
      _
    $region19: #{rnn_unit_forward.1} parent=1 // pred_check_branch
      %38 = sbr.rel (%p35) target = $region21
    $region20: #{rnn_unit_forward.1} parent=1 // pred_region
      %v39 = vld [vmem:[%s1] sm:$0xff]
      %v40 = vld [vmem:[%s1 + $0x8] sm:$0xff]
      %41 = vst [vmem:[%s4] sm:$0xff] %v39
      %42 = vst [vmem:[%s4 + $0x8] sm:$0xff] %v40
    $region21: #{rnn_unit_forward.1} parent=1 // pred_fallthru
      _
    // Predicated region
    $region22: #{rnn_unit_forward.1} parent=1 // pred_check
      %p43 = pneg %p34
    $region23: #{rnn_unit_forward.1} parent=1 // pred_check_branch
      %45 = sbr.rel (%p43) target = $region25
    $region24: #{rnn_unit_forward.1} parent=1 // pred_region
      %v46 = vld [vmem:[%s0] sm:$0xf]
      %47 = vst [vmem:[#allocation2] sm:$0xf] %v46
    $region25: #{rnn_unit_forward.1} parent=1 // pred_fallthru
      _
    %s48 = smul.u32 0, 2
    %s49 = smul.addr %s48, 8
    %s50 = scalar_lea.vmem %s4, %s49
    %v51 = vld [vmem:[%s50] sm:$0xff]
    %v52 = vld [vmem:[%s50 + $0x8] sm:$0xff]
    %v53 = vpack.c.bf16 %v51, %v51
    %54 = vst [vmem:[#allocation2 + $0x4] sm:$0xf] %v53
    %v55 = vld [vmem:[#allocation2] sm:$0xff]
    %s56 = smul.u32 0, 128
    %s57 = smul.addr %s56, 4
    %s58 = scalar_lea.vmem [#allocation3], %s57
    %v59 = vld [vmem:[%s58] sm:$0xff]
    %v60 = vld [vmem:[%s58 + $0x8] sm:$0xff]
    %v61 = vld [vmem:[%s58 + $0x10] sm:$0xff]
    %v62 = vld [vmem:[%s58 + $0x18] sm:$0xff]
    %v63 = vld [vmem:[%s58 + $0x20] sm:$0xff]
    %v64 = vld [vmem:[%s58 + $0x28] sm:$0xff]
    %v65 = vld [vmem:[%s58 + $0x30] sm:$0xff]
    %v66 = vld [vmem:[%s58 + $0x38] sm:$0xff]
    %v67 = vld [vmem:[%s58 + $0x40] sm:$0xff]
    %v68 = vld [vmem:[%s58 + $0x48] sm:$0xff]
    %v69 = vld [vmem:[%s58 + $0x50] sm:$0xff]
    %v70 = vld [vmem:[%s58 + $0x58] sm:$0xff]
    %v71 = vld [vmem:[%s58 + $0x60] sm:$0xff]
    %v72 = vld [vmem:[%s58 + $0x68] sm:$0xff]
    %v73 = vld [vmem:[%s58 + $0x70] sm:$0xff]
    %v74 = vld [vmem:[%s58 + $0x78] sm:$0xff]
    %v75 = vld [vmem:[%s58 + $0x80] sm:$0xff]
    %v76 = vld [vmem:[%s58 + $0x88] sm:$0xff]
    %v77 = vld [vmem:[%s58 + $0x90] sm:$0xff]
    %v78 = vld [vmem:[%s58 + $0x98] sm:$0xff]
    %v79 = vld [vmem:[%s58 + $0xa0] sm:$0xff]
    %v80 = vld [vmem:[%s58 + $0xa8] sm:$0xff]
    %v81 = vld [vmem:[%s58 + $0xb0] sm:$0xff]
    %v82 = vld [vmem:[%s58 + $0xb8] sm:$0xff]
    %v83 = vld [vmem:[%s58 + $0xc0] sm:$0xff]
    %v84 = vld [vmem:[%s58 + $0xc8] sm:$0xff]
    %v85 = vld [vmem:[%s58 + $0xd0] sm:$0xff]
    %v86 = vld [vmem:[%s58 + $0xd8] sm:$0xff]
    %v87 = vld [vmem:[%s58 + $0xe0] sm:$0xff]
    %v88 = vld [vmem:[%s58 + $0xe8] sm:$0xff]
    %v89 = vld [vmem:[%s58 + $0xf0] sm:$0xff]
    %v90 = vld [vmem:[%s58 + $0xf8] sm:$0xff]
    %v91 = vld [vmem:[%s58 + $0x100] sm:$0xff]
    %v92 = vld [vmem:[%s58 + $0x108] sm:$0xff]
    %v93 = vld [vmem:[%s58 + $0x110] sm:$0xff]
    %v94 = vld [vmem:[%s58 + $0x118] sm:$0xff]
    %v95 = vld [vmem:[%s58 + $0x120] sm:$0xff]
    %v96 = vld [vmem:[%s58 + $0x128] sm:$0xff]
    %v97 = vld [vmem:[%s58 + $0x130] sm:$0xff]
    %v98 = vld [vmem:[%s58 + $0x138] sm:$0xff]
    %v99 = vld [vmem:[%s58 + $0x140] sm:$0xff]
    %v100 = vld [vmem:[%s58 + $0x148] sm:$0xff]
    %v101 = vld [vmem:[%s58 + $0x150] sm:$0xff]
    %v102 = vld [vmem:[%s58 + $0x158] sm:$0xff]
    %v103 = vld [vmem:[%s58 + $0x160] sm:$0xff]
    %v104 = vld [vmem:[%s58 + $0x168] sm:$0xff]
    %v105 = vld [vmem:[%s58 + $0x170] sm:$0xff]
    %v106 = vld [vmem:[%s58 + $0x178] sm:$0xff]
    %v107 = vld [vmem:[%s58 + $0x180] sm:$0xff]
    %v108 = vld [vmem:[%s58 + $0x188] sm:$0xff]
    %v109 = vld [vmem:[%s58 + $0x190] sm:$0xff]
    %v110 = vld [vmem:[%s58 + $0x198] sm:$0xff]
    %v111 = vld [vmem:[%s58 + $0x1a0] sm:$0xff]
    %v112 = vld [vmem:[%s58 + $0x1a8] sm:$0xff]
    %v113 = vld [vmem:[%s58 + $0x1b0] sm:$0xff]
    %v114 = vld [vmem:[%s58 + $0x1b8] sm:$0xff]
    %v115 = vld [vmem:[%s58 + $0x1c0] sm:$0xff]
    %v116 = vld [vmem:[%s58 + $0x1c8] sm:$0xff]
    %v117 = vld [vmem:[%s58 + $0x1d0] sm:$0xff]
    %v118 = vld [vmem:[%s58 + $0x1d8] sm:$0xff]
    %v119 = vld [vmem:[%s58 + $0x1e0] sm:$0xff]
    %v120 = vld [vmem:[%s58 + $0x1e8] sm:$0xff]
    %v121 = vld [vmem:[%s58 + $0x1f0] sm:$0xff]
    %v122 = vld [vmem:[%s58 + $0x1f8] sm:$0xff]
    %v124 = vunpack.c.l.b16 %v55
    %v125 = vunpack.c.h.b16 %v55
    %v126 = vpack.c.b16 %v124, %v124
    %v127 = vpack.c.b16 %v125, %v125
    %v194 = vunpack.c.l.b16 %v59
    %v195 = vunpack.c.h.b16 %v59
    %v196 = vunpack.c.l.b16 %v60
    %v197 = vunpack.c.h.b16 %v60
    %v198 = vunpack.c.l.b16 %v61
    %v199 = vunpack.c.h.b16 %v61
    %v200 = vunpack.c.l.b16 %v62
    %v201 = vunpack.c.h.b16 %v62
    %v202 = vunpack.c.l.b16 %v63
    %v203 = vunpack.c.h.b16 %v63
    %v204 = vunpack.c.l.b16 %v64
    %v205 = vunpack.c.h.b16 %v64
    %v206 = vunpack.c.l.b16 %v65
    %v207 = vunpack.c.h.b16 %v65
    %v208 = vunpack.c.l.b16 %v66
    %v209 = vunpack.c.h.b16 %v66
    %v210 = vunpack.c.l.b16 %v67
    %v211 = vunpack.c.h.b16 %v67
    %v212 = vunpack.c.l.b16 %v68
    %v213 = vunpack.c.h.b16 %v68
    %v214 = vunpack.c.l.b16 %v69
    %v215 = vunpack.c.h.b16 %v69
    %v216 = vunpack.c.l.b16 %v70
    %v217 = vunpack.c.h.b16 %v70
    %v218 = vunpack.c.l.b16 %v71
    %v219 = vunpack.c.h.b16 %v71
    %v220 = vunpack.c.l.b16 %v72
    %v221 = vunpack.c.h.b16 %v72
    %v222 = vunpack.c.l.b16 %v73
    %v223 = vunpack.c.h.b16 %v73
    %v224 = vunpack.c.l.b16 %v74
    %v225 = vunpack.c.h.b16 %v74
    %v226 = vunpack.c.l.b16 %v75
    %v227 = vunpack.c.h.b16 %v75
    %v228 = vunpack.c.l.b16 %v76
    %v229 = vunpack.c.h.b16 %v76
    %v230 = vunpack.c.l.b16 %v77
    %v231 = vunpack.c.h.b16 %v77
    %v232 = vunpack.c.l.b16 %v78
    %v233 = vunpack.c.h.b16 %v78
    %v234 = vunpack.c.l.b16 %v79
    %v235 = vunpack.c.h.b16 %v79
    %v236 = vunpack.c.l.b16 %v80
    %v237 = vunpack.c.h.b16 %v80
    %v238 = vunpack.c.l.b16 %v81
    %v239 = vunpack.c.h.b16 %v81
    %v240 = vunpack.c.l.b16 %v82
    %v241 = vunpack.c.h.b16 %v82
    %v242 = vunpack.c.l.b16 %v83
    %v243 = vunpack.c.h.b16 %v83
    %v244 = vunpack.c.l.b16 %v84
    %v245 = vunpack.c.h.b16 %v84
    %v246 = vunpack.c.l.b16 %v85
    %v247 = vunpack.c.h.b16 %v85
    %v248 = vunpack.c.l.b16 %v86
    %v249 = vunpack.c.h.b16 %v86
    %v250 = vunpack.c.l.b16 %v87
    %v251 = vunpack.c.h.b16 %v87
    %v252 = vunpack.c.l.b16 %v88
    %v253 = vunpack.c.h.b16 %v88
    %v254 = vunpack.c.l.b16 %v89
    %v255 = vunpack.c.h.b16 %v89
    %v256 = vunpack.c.l.b16 %v90
    %v257 = vunpack.c.h.b16 %v90
    %v258 = vunpack.c.l.b16 %v91
    %v259 = vunpack.c.h.b16 %v91
    %v260 = vunpack.c.l.b16 %v92
    %v261 = vunpack.c.h.b16 %v92
    %v262 = vunpack.c.l.b16 %v93
    %v263 = vunpack.c.h.b16 %v93
    %v264 = vunpack.c.l.b16 %v94
    %v265 = vunpack.c.h.b16 %v94
    %v266 = vunpack.c.l.b16 %v95
    %v267 = vunpack.c.h.b16 %v95
    %v268 = vunpack.c.l.b16 %v96
    %v269 = vunpack.c.h.b16 %v96
    %v270 = vunpack.c.l.b16 %v97
    %v271 = vunpack.c.h.b16 %v97
    %v272 = vunpack.c.l.b16 %v98
    %v273 = vunpack.c.h.b16 %v98
    %v274 = vunpack.c.l.b16 %v99
    %v275 = vunpack.c.h.b16 %v99
    %v276 = vunpack.c.l.b16 %v100
    %v277 = vunpack.c.h.b16 %v100
    %v278 = vunpack.c.l.b16 %v101
    %v279 = vunpack.c.h.b16 %v101
    %v280 = vunpack.c.l.b16 %v102
    %v281 = vunpack.c.h.b16 %v102
    %v282 = vunpack.c.l.b16 %v103
    %v283 = vunpack.c.h.b16 %v103
    %v284 = vunpack.c.l.b16 %v104
    %v285 = vunpack.c.h.b16 %v104
    %v286 = vunpack.c.l.b16 %v105
    %v287 = vunpack.c.h.b16 %v105
    %v288 = vunpack.c.l.b16 %v106
    %v289 = vunpack.c.h.b16 %v106
    %v290 = vunpack.c.l.b16 %v107
    %v291 = vunpack.c.h.b16 %v107
    %v292 = vunpack.c.l.b16 %v108
    %v293 = vunpack.c.h.b16 %v108
    %v294 = vunpack.c.l.b16 %v109
    %v295 = vunpack.c.h.b16 %v109
    %v296 = vunpack.c.l.b16 %v110
    %v297 = vunpack.c.h.b16 %v110
    %v298 = vunpack.c.l.b16 %v111
    %v299 = vunpack.c.h.b16 %v111
    %v300 = vunpack.c.l.b16 %v112
    %v301 = vunpack.c.h.b16 %v112
    %v302 = vunpack.c.l.b16 %v113
    %v303 = vunpack.c.h.b16 %v113
    %v304 = vunpack.c.l.b16 %v114
    %v305 = vunpack.c.h.b16 %v114
    %v306 = vunpack.c.l.b16 %v115
    %v307 = vunpack.c.h.b16 %v115
    %v308 = vunpack.c.l.b16 %v116
    %v309 = vunpack.c.h.b16 %v116
    %v310 = vunpack.c.l.b16 %v117
    %v311 = vunpack.c.h.b16 %v117
    %v312 = vunpack.c.l.b16 %v118
    %v313 = vunpack.c.h.b16 %v118
    %v314 = vunpack.c.l.b16 %v119
    %v315 = vunpack.c.h.b16 %v119
    %v316 = vunpack.c.l.b16 %v120
    %v317 = vunpack.c.h.b16 %v120
    %v318 = vunpack.c.l.b16 %v121
    %v319 = vunpack.c.h.b16 %v121
    %v320 = vunpack.c.l.b16 %v122
    %v321 = vunpack.c.h.b16 %v122
    %v322 = vpack.c.b16 %v198, %v194
    %v323 = vpack.c.b16 %v199, %v195
    %v324 = vpack.c.b16 %v200, %v196
    %v325 = vpack.c.b16 %v201, %v197
    %v326 = vpack.c.b16 %v206, %v202
    %v327 = vpack.c.b16 %v207, %v203
    %v328 = vpack.c.b16 %v208, %v204
    %v329 = vpack.c.b16 %v209, %v205
    %v330 = vpack.c.b16 %v214, %v210
    %v331 = vpack.c.b16 %v215, %v211
    %v332 = vpack.c.b16 %v216, %v212
    %v333 = vpack.c.b16 %v217, %v213
    %v334 = vpack.c.b16 %v222, %v218
    %v335 = vpack.c.b16 %v223, %v219
    %v336 = vpack.c.b16 %v224, %v220
    %v337 = vpack.c.b16 %v225, %v221
    %v338 = vpack.c.b16 %v230, %v226
    %v339 = vpack.c.b16 %v231, %v227
    %v340 = vpack.c.b16 %v232, %v228
    %v341 = vpack.c.b16 %v233, %v229
    %v342 = vpack.c.b16 %v238, %v234
    %v343 = vpack.c.b16 %v239, %v235
    %v344 = vpack.c.b16 %v240, %v236
    %v345 = vpack.c.b16 %v241, %v237
    %v346 = vpack.c.b16 %v246, %v242
    %v347 = vpack.c.b16 %v247, %v243
    %v348 = vpack.c.b16 %v248, %v244
    %v349 = vpack.c.b16 %v249, %v245
    %v350 = vpack.c.b16 %v254, %v250
    %v351 = vpack.c.b16 %v255, %v251
    %v352 = vpack.c.b16 %v256, %v252
    %v353 = vpack.c.b16 %v257, %v253
    %v354 = vpack.c.b16 %v262, %v258
    %v355 = vpack.c.b16 %v263, %v259
    %v356 = vpack.c.b16 %v264, %v260
    %v357 = vpack.c.b16 %v265, %v261
    %v358 = vpack.c.b16 %v270, %v266
    %v359 = vpack.c.b16 %v271, %v267
    %v360 = vpack.c.b16 %v272, %v268
    %v361 = vpack.c.b16 %v273, %v269
    %v362 = vpack.c.b16 %v278, %v274
    %v363 = vpack.c.b16 %v279, %v275
    %v364 = vpack.c.b16 %v280, %v276
    %v365 = vpack.c.b16 %v281, %v277
    %v366 = vpack.c.b16 %v286, %v282
    %v367 = vpack.c.b16 %v287, %v283
    %v368 = vpack.c.b16 %v288, %v284
    %v369 = vpack.c.b16 %v289, %v285
    %v370 = vpack.c.b16 %v294, %v290
    %v371 = vpack.c.b16 %v295, %v291
    %v372 = vpack.c.b16 %v296, %v292
    %v373 = vpack.c.b16 %v297, %v293
    %v374 = vpack.c.b16 %v302, %v298
    %v375 = vpack.c.b16 %v303, %v299
    %v376 = vpack.c.b16 %v304, %v300
    %v377 = vpack.c.b16 %v305, %v301
    %v378 = vpack.c.b16 %v310, %v306
    %v379 = vpack.c.b16 %v311, %v307
    %v380 = vpack.c.b16 %v312, %v308
    %v381 = vpack.c.b16 %v313, %v309
    %v382 = vpack.c.b16 %v318, %v314
    %v383 = vpack.c.b16 %v319, %v315
    %v384 = vpack.c.b16 %v320, %v316
    %v385 = vpack.c.b16 %v321, %v317
    %450 = vmatpush.bf16.msra.mxu0 %v350
    %451 = vmatpush.bf16.msra.mxu0 %v346
    %452 = vmatpush.bf16.msra.mxu0 %v342
    %453 = vmatpush.bf16.msra.mxu0 %v338
    %454 = vmatpush.bf16.msra.mxu0 %v334
    %455 = vmatpush.bf16.msra.mxu0 %v330
    %456 = vmatpush.bf16.msra.mxu0 %v326
    %457 = vmatpush.bf16.msra.mxu0 %v322
    %458 = vmatmul.bf16.gmra.mxu0 %v126
    %v459 = vpop.f32.mrf.mxu0
    %v460 = vadd.f32 0.0, %v459
    %v461 = vpop.f32.mrf.mxu0
    %462 = vdwg.mxu0
    %463 = vmatpush.bf16.msra.mxu0 %v382
    %464 = vmatpush.bf16.msra.mxu0 %v378
    %465 = vmatpush.bf16.msra.mxu0 %v374
    %466 = vmatpush.bf16.msra.mxu0 %v370
    %467 = vmatpush.bf16.msra.mxu0 %v366
    %468 = vmatpush.bf16.msra.mxu0 %v362
    %469 = vmatpush.bf16.msra.mxu0 %v358
    %470 = vmatpush.bf16.msra.mxu0 %v354
    %471 = vmatmul.bf16.gmra.mxu0 %v127
    %v472 = vpop.f32.mrf.mxu0
    %v473 = vadd.f32 %v460, %v472
    %v474 = vpop.f32.mrf.mxu0
    %475 = vdwg.mxu0
    %476 = vmatpush.bf16.msra.mxu0 %v351
    %477 = vmatpush.bf16.msra.mxu0 %v347
    %478 = vmatpush.bf16.msra.mxu0 %v343
    %479 = vmatpush.bf16.msra.mxu0 %v339
    %480 = vmatpush.bf16.msra.mxu0 %v335
    %481 = vmatpush.bf16.msra.mxu0 %v331
    %482 = vmatpush.bf16.msra.mxu0 %v327
    %483 = vmatpush.bf16.msra.mxu0 %v323
    %484 = vmatmul.bf16.gmra.mxu0 %v126
    %v485 = vpop.f32.mrf.mxu0
    %v486 = vadd.f32 0.0, %v485
    %v487 = vpop.f32.mrf.mxu0
    %488 = vdwg.mxu0
    %489 = vmatpush.bf16.msra.mxu0 %v383
    %490 = vmatpush.bf16.msra.mxu0 %v379
    %491 = vmatpush.bf16.msra.mxu0 %v375
    %492 = vmatpush.bf16.msra.mxu0 %v371
    %493 = vmatpush.bf16.msra.mxu0 %v367
    %494 = vmatpush.bf16.msra.mxu0 %v363
    %495 = vmatpush.bf16.msra.mxu0 %v359
    %496 = vmatpush.bf16.msra.mxu0 %v355
    %497 = vmatmul.bf16.gmra.mxu0 %v127
    %v498 = vpop.f32.mrf.mxu0
    %v499 = vadd.f32 %v486, %v498
    %v500 = vpop.f32.mrf.mxu0
    %501 = vdwg.mxu0
    %502 = vmatpush.bf16.msra.mxu0 %v352
    %503 = vmatpush.bf16.msra.mxu0 %v348
    %504 = vmatpush.bf16.msra.mxu0 %v344
    %505 = vmatpush.bf16.msra.mxu0 %v340
    %506 = vmatpush.bf16.msra.mxu0 %v336
    %507 = vmatpush.bf16.msra.mxu0 %v332
    %508 = vmatpush.bf16.msra.mxu0 %v328
    %509 = vmatpush.bf16.msra.mxu0 %v324
    %510 = vmatmul.bf16.gmra.mxu0 %v126
    %v511 = vpop.f32.mrf.mxu0
    %v512 = vadd.f32 0.0, %v511
    %v513 = vpop.f32.mrf.mxu0
    %514 = vdwg.mxu0
    %515 = vmatpush.bf16.msra.mxu0 %v384
    %516 = vmatpush.bf16.msra.mxu0 %v380
    %517 = vmatpush.bf16.msra.mxu0 %v376
    %518 = vmatpush.bf16.msra.mxu0 %v372
    %519 = vmatpush.bf16.msra.mxu0 %v368
    %520 = vmatpush.bf16.msra.mxu0 %v364
    %521 = vmatpush.bf16.msra.mxu0 %v360
    %522 = vmatpush.bf16.msra.mxu0 %v356
    %523 = vmatmul.bf16.gmra.mxu0 %v127
    %v524 = vpop.f32.mrf.mxu0
    %v525 = vadd.f32 %v512, %v524
    %v526 = vpop.f32.mrf.mxu0
    %527 = vdwg.mxu0
    %528 = vmatpush.bf16.msra.mxu0 %v353
    %529 = vmatpush.bf16.msra.mxu0 %v349
    %530 = vmatpush.bf16.msra.mxu0 %v345
    %531 = vmatpush.bf16.msra.mxu0 %v341
    %532 = vmatpush.bf16.msra.mxu0 %v337
    %533 = vmatpush.bf16.msra.mxu0 %v333
    %534 = vmatpush.bf16.msra.mxu0 %v329
    %535 = vmatpush.bf16.msra.mxu0 %v325
    %536 = vmatmul.bf16.gmra.mxu0 %v126
    %v537 = vpop.f32.mrf.mxu0
    %v538 = vadd.f32 0.0, %v537
    %v539 = vpop.f32.mrf.mxu0
    %540 = vdwg.mxu0
    %541 = vmatpush.bf16.msra.mxu0 %v385
    %542 = vmatpush.bf16.msra.mxu0 %v381
    %543 = vmatpush.bf16.msra.mxu0 %v377
    %544 = vmatpush.bf16.msra.mxu0 %v373
    %545 = vmatpush.bf16.msra.mxu0 %v369
    %546 = vmatpush.bf16.msra.mxu0 %v365
    %547 = vmatpush.bf16.msra.mxu0 %v361
    %548 = vmatpush.bf16.msra.mxu0 %v357
    %549 = vmatmul.bf16.gmra.mxu0 %v127
    %v550 = vpop.f32.mrf.mxu0
    %v551 = vadd.f32 %v538, %v550
    %v552 = vpop.f32.mrf.mxu0
    %553 = vdwg.mxu0
    %v554 = vxor.u32 %v473, 2147483648
    %v555 = vmul.f32 %v554, 1.442695
    %v556 = vpow.pop %v555
    %v557 = vadd.f32 %v556, 1.0
    %v558 = vrcp.pop %v557
    %v559 = vmul.f32 %v557, %v558
    %v560 = vsub.f32 1.0, %v559
    %v561 = vmul.f32 %v558, %v560
    %v562 = vadd.f32 %v558, %v561
    %vm563 = vweird.f32 %v557
    %vm564 = vweird.f32 %v558
    %vm565 = vmor %vm563, %vm564
    %v566 = vsel %vm565, %v558, %v562
    %v567 = vand.u32 2147483647, %v557
    %vm568 = vcmp.eq.f32.partialorder %v567, 8.507059e+37
    %v569 = vand.u32 %v557, 2147483648
    %v570 = vor.u32 1.1754944e-38, %v569
    %v571 = vsel %vm568, %v570, %v566
    %v572 = vmul.f32 1.0, %v571
    %v573 = vxor.u32 %v499, 2147483648
    %v574 = vmul.f32 %v573, 1.442695
    %v575 = vpow.pop %v574
    %v576 = vadd.f32 %v575, 1.0
    %v577 = vrcp.pop %v576
    %v578 = vmul.f32 %v576, %v577
    %v579 = vsub.f32 1.0, %v578
    %v580 = vmul.f32 %v577, %v579
    %v581 = vadd.f32 %v577, %v580
    %vm582 = vweird.f32 %v576
    %vm583 = vweird.f32 %v577
    %vm584 = vmor %vm582, %vm583
    %v585 = vsel %vm584, %v577, %v581
    %v586 = vand.u32 2147483647, %v576
    %vm587 = vcmp.eq.f32.partialorder %v586, 8.507059e+37
    %v588 = vand.u32 %v576, 2147483648
    %v589 = vor.u32 1.1754944e-38, %v588
    %v590 = vsel %vm587, %v589, %v585
    %v591 = vmul.f32 1.0, %v590
    %v592 = vtanh.pop %v525
    %v593 = vxor.u32 %v551, 2147483648
    %v594 = vmul.f32 %v593, 1.442695
    %v595 = vpow.pop %v594
    %v596 = vadd.f32 %v595, 1.0
    %v597 = vrcp.pop %v596
    %v598 = vmul.f32 %v596, %v597
    %v599 = vsub.f32 1.0, %v598
    %v600 = vmul.f32 %v597, %v599
    %v601 = vadd.f32 %v597, %v600
    %vm602 = vweird.f32 %v596
    %vm603 = vweird.f32 %v597
    %vm604 = vmor %vm602, %vm603
    %v605 = vsel %vm604, %v597, %v601
    %v606 = vand.u32 2147483647, %v596
    %vm607 = vcmp.eq.f32.partialorder %v606, 8.507059e+37
    %v608 = vand.u32 %v596, 2147483648
    %v609 = vor.u32 1.1754944e-38, %v608
    %v610 = vsel %vm607, %v609, %v605
    %v611 = vmul.f32 1.0, %v610
    %v612 = vmul.f32 %v591, %v52
    %v613 = vmul.f32 %v572, %v592
    %v614 = vadd.f32 %v612, %v613
    %v615 = vtanh.pop %v614
    %v616 = vmul.f32 %v611, %v615
    %617 = vst [vmem:[%s50] sm:$0xff] %v616
    %618 = vst [vmem:[%s50 + $0x8] sm:$0xff] %v614
    // Predicated region
    $region26: #{rnn_unit_forward.1} parent=1 // pred_check
      %p619 = pneg %p34
    $region27: #{rnn_unit_forward.1} parent=1 // pred_check_branch
      %621 = sbr.rel (%p619) target = $region29
    $region28: #{rnn_unit_forward.1} parent=1 // pred_region
      %622 = vst [vmem:[#allocation6] sm:$0xff] %v616
    $region29: #{rnn_unit_forward.1} parent=1 // pred_fallthru
      _
    %s623 = sadd.s32 0, 1
    %p624 = scmp.lt.s32.totalorder %s623, 1
    // Predicated region
    $region30: #{rnn_unit_forward.1} parent=1 // pred_check
      %p625 = pneg %p624
    $region31: #{rnn_unit_forward.1} parent=1 // pred_check_branch
      %627 = sbr.rel (%p625) target = $region33
    $region32: #{rnn_unit_forward.1} parent=1 // pred_region
      %v628 = vpack.c.bf16 %v616, %v616
      %629 = vst [vmem:[#allocation2] sm:$0xf] %v628
    $region33: #{rnn_unit_forward.1} parent=1 // pred_fallthru
      _
    // Predicated region
    $region34: #{rnn_unit_forward.1} parent=1 // pred_check
      _
    $region35: #{rnn_unit_forward.1} parent=1 // pred_check_branch
      %631 = sbr.rel (0) target = $region37
    $region36: #{rnn_unit_forward.1} parent=1 // pred_region
      %633 = vsyncadd [#allocation5], 0
      %s635 = sshll.u32 [#allocation6], 4
      %s636 = int_to_ptr.vmem [resolvable:$true] %s635
      %s637 = sshll.u32 %s3, 4
      %s638 = int_to_ptr.hbm [resolvable:$true] %s637
      %640 = dma.vmem_to_hbm [thread:$0]  %s636, 128, %s638, [#allocation5]
    $region37: #{rnn_unit_forward.1} parent=1 // pred_fallthru
      _
    // Predicated region
    $region38: #{rnn_unit_forward.1} parent=1 // pred_check
      _
    $region39: #{rnn_unit_forward.1} parent=1 // pred_check_branch
      %642 = sbr.rel (0) target = $region41
    $region40: #{rnn_unit_forward.1} parent=1 // pred_region
      _
    $region41: #{rnn_unit_forward.1} parent=1 // pred_fallthru
      _
    // Predicated region
    $region42: #{rnn_unit_forward.1} parent=1 // pred_check
      _
    $region43: #{rnn_unit_forward.1} parent=1 // pred_check_branch
      %644 = sbr.rel (0) target = $region45
    $region44: #{rnn_unit_forward.1} parent=1 // pred_region
      %646 = dma.done [#allocation5], 128
    $region45: #{rnn_unit_forward.1} parent=1 // pred_fallthru
      _
    // Predicated region
    $region46: #{rnn_unit_forward.1} parent=1 // pred_check
      _
    $region47: #{rnn_unit_forward.1} parent=1 // pred_check_branch
      %648 = sbr.rel (0) target = $region49
    $region48: #{rnn_unit_forward.1} parent=1 // pred_region
      _
    $region49: #{rnn_unit_forward.1} parent=1 // pred_fallthru
      _
    %649 = vsyncpa [#allocation4], 1
    %650 = vsyncpa [#allocation5], 1

</llo_original>
